<compile_context>
chip_gen: v7x
topology: tpu7x:2x2x1
jax: 0.10.0
libtpu: 0.0.40
codegen_flags: <defaults>
</compile_context>

<pallas_src>
import jax
import jax.numpy as jnp
from jax.experimental import pallas as pl
from jax.experimental.pallas import tpu as pltpu


ROWS_PER_STEP = 8  # gathered embedding rows per grid step (8-16 is the sweet spot)


def _gather_kernel(eff_ref, table_hbm, out_ref, rowbuf, sem):
    # eff_ref:   (B_pad,) int32 in SMEM (scalar prefetch) -- effective labels
    # table_hbm: (V, H) in HBM (memory_space=pl.ANY), never fully loaded
    # out_ref:   (R, H) VMEM block of the (B_pad, H) output
    # rowbuf:    (R, H) VMEM scratch receiving the gathered rows
    # sem:       (R,) DMA semaphores
    g = pl.program_id(0)
    rows = out_ref.shape[0]          # static R
    base = g * rows

    def row_copy(r):
        idx = eff_ref[base + r]      # dynamic row index from SMEM
        return pltpu.make_async_copy(
            table_hbm.at[pl.ds(idx, 1)],   # (1, H) slice of the HBM table
            rowbuf.at[pl.ds(r, 1)],        # (1, H) slot in VMEM scratch
            sem.at[r],
        )

    # Issue all R row-DMAs first so they run concurrently, then wait.
    for r in range(rows):            # static unroll (R is small)
        row_copy(r).start()
    for r in range(rows):
        row_copy(r).wait()

    # Single lane-dense store of the whole (R, H) block.
    out_ref[...] = rowbuf[...]


def label_embed_pallas(eff_labels_i32, table, rows_per_step=ROWS_PER_STEP):
    """eff_labels_i32: (B,) int32 effective (post-drop, clamped) labels.
    table: (V, H) embedding table. Returns (B, H) gathered rows."""
    B = eff_labels_i32.shape[0]
    V, H = table.shape
    R = rows_per_step
    B_pad = ((B + R - 1) // R) * R
    if B_pad != B:
        # Pad with index 0 (valid row); padded outputs are sliced off below.
        eff_labels_i32 = jnp.pad(eff_labels_i32, (0, B_pad - B))

    out = pl.pallas_call(
        _gather_kernel,
        out_shape=jax.ShapeDtypeStruct((B_pad, H), table.dtype),
        grid_spec=pltpu.PrefetchScalarGridSpec(
            num_scalar_prefetch=1,                       # eff labels -> SMEM
            grid=(B_pad // R,),
            in_specs=[pl.BlockSpec(memory_space=pl.ANY)],  # table stays in HBM
            out_specs=pl.BlockSpec((R, H), lambda g, eff: (g, 0)),
            scratch_shapes=[
                pltpu.VMEM((R, H), table.dtype),
                pltpu.SemaphoreType.DMA((R,)),
            ],
        ),
        compiler_params=pltpu.CompilerParams(
            dimension_semantics=("parallel",),           # shard steps across TCs (v7x)
        ),
    )(eff_labels_i32, table)
    return out[:B]


class LabelEmbedder:
    """JAX/Pallas port of DiT's LabelEmbedder."""

    def __init__(self, num_classes, hidden_size, dropout_prob, key):
        use_cfg_embedding = int(dropout_prob > 0)
        # nn.Embedding default init: N(0, 1)
        self.embedding_table = jax.random.normal(
            key, (num_classes + use_cfg_embedding, hidden_size), dtype=jnp.float32
        )
        self.num_classes = num_classes
        self.dropout_prob = dropout_prob

    def __call__(self, labels, train, rng=None, force_drop_ids=None):
        labels = labels.astype(jnp.int32)
        B = labels.shape[0]
        use_dropout = self.dropout_prob > 0

        # CFG label drop (token_drop) -- hoisted out of the kernel: one where()
        # over B scalars, fuses into surrounding XLA.
        if (train and use_dropout) or (force_drop_ids is not None):
            if force_drop_ids is None:
                drop_ids = jax.random.uniform(rng, (B,)) < self.dropout_prob
            else:
                drop_ids = force_drop_ids == 1
            labels = jnp.where(drop_ids, self.num_classes, labels)

        # Clamp to valid rows (matches jnp.take's clip semantics).  Note: if
        # dropout_prob == 0 there is no CFG row, so a forced drop maps to the
        # last real class here, whereas PyTorch would raise an OOB error.
        # TODO(synk): no clean in-kernel equivalent of nn.Embedding's OOB error.
        V = self.embedding_table.shape[0]
        eff = jnp.clip(labels, 0, V - 1).astype(jnp.int32)

        return label_embed_pallas(eff, self.embedding_table)


if __name__ == "__main__":
    key = jax.random.PRNGKey(0)
    k_table, k_labels, k_drop = jax.random.split(key, 3)

    num_classes = 10
    hidden_size = 32
    dropout_prob = 0.1
    batch = 8

    embedder = LabelEmbedder(num_classes, hidden_size, dropout_prob, k_table)
    labels = jax.random.randint(k_labels, (batch,), 0, num_classes, dtype=jnp.int32)

    # Eval path (no dropout): pure embedding gather.
    out_eval = jax.block_until_ready(embedder(labels, train=False))
    ref_eval = jnp.take(embedder.embedding_table, labels, axis=0)
    assert out_eval.shape == (batch, hidden_size)
    assert jnp.allclose(out_eval, ref_eval, atol=1e-6), "eval mismatch"

    # Train path with random label dropout (CFG).
    out_train = jax.block_until_ready(embedder(labels, train=True, rng=k_drop))
    assert out_train.shape == (batch, hidden_size)

    # Forced-drop path (all labels -> null/CFG class).
    force = jnp.ones((batch,), dtype=jnp.int32)
    out_forced = jax.block_until_ready(
        embedder(labels, train=False, force_drop_ids=force)
    )
    ref_forced = jnp.take(
        embedder.embedding_table,
        jnp.full((batch,), num_classes, dtype=jnp.int32),
        axis=0,
    )
    assert jnp.allclose(out_forced, ref_forced, atol=1e-6), "forced-drop mismatch"

    # Ragged batch (exercises padding of B up to a multiple of ROWS_PER_STEP).
    labels5 = labels[:5]
    out5 = jax.block_until_ready(embedder(labels5, train=False))
    ref5 = jnp.take(embedder.embedding_table, labels5, axis=0)
    assert out5.shape == (5, hidden_size)
    assert jnp.allclose(out5, ref5, atol=1e-6), "ragged-batch mismatch"

    print("KERNEL_OK")
</pallas_src>

<mosaic_0001>
module attributes {stable_mosaic.version = 11 : i64} {
  func.func @_gather_kernel(%arg0: i32, %arg1: memref<8xi32, #tpu.memory_space<smem>>, %arg2: memref<11x32xf32, #tpu.memory_space<any>>, %arg3: memref<8x32xf32, #tpu.memory_space<vmem>>, %arg4: memref<8x32xf32, #tpu.memory_space<vmem>>, %arg5: memref<8x!tpu.dma_semaphore, #tpu.memory_space<semaphore_mem>>) attributes {dimension_semantics = [#tpu.dimension_semantics<parallel>], iteration_bounds = array<i64: 1>, scalar_prefetch = 1 : i64, scratch_operands = 2 : i64, tpu.core_type = #tpu.core_type<tc>, window_params = [{}, {transform_indices = @transform_1, window_bounds = array<i64: 8, 32>}]} {
    %c8_i32 = arith.constant 8 : i32
    %0 = arith.muli %arg0, %c8_i32 : i32
    %c0_i32 = arith.constant 0 : i32
    %1 = arith.addi %0, %c0_i32 : i32
    %2 = arith.index_cast %1 : i32 to index
    %3 = memref.load %arg1[%2] : memref<8xi32, #tpu.memory_space<smem>>
    %c0_i32_0 = arith.constant 0 : i32
    %c0_i32_1 = arith.constant 0 : i32
    %4 = tpu.memref_slice %arg2[%3, %c0_i32_1] : memref<11x32xf32, #tpu.memory_space<any>> -> memref<1x32xf32, #tpu.memory_space<any>>
    %c0_i32_2 = arith.constant 0 : i32
    %c0_i32_3 = arith.constant 0 : i32
    %5 = tpu.memref_slice %arg4[%c0_i32_2, %c0_i32_3] : memref<8x32xf32, #tpu.memory_space<vmem>> -> memref<1x32xf32, #tpu.memory_space<vmem>>
    %6 = tpu.memref_slice %arg5[%c0_i32_0] : memref<8x!tpu.dma_semaphore, #tpu.memory_space<semaphore_mem>> -> memref<1x!tpu.dma_semaphore, #tpu.memory_space<semaphore_mem>>
    %7 = tpu.memref_squeeze %6 : memref<1x!tpu.dma_semaphore, #tpu.memory_space<semaphore_mem>> -> memref<!tpu.dma_semaphore, #tpu.memory_space<semaphore_mem>>
    tpu.enqueue_dma source(%4 : memref<1x32xf32, #tpu.memory_space<any>>) target(%5 : memref<1x32xf32, #tpu.memory_space<vmem>>) target_semaphore(%7 : memref<!tpu.dma_semaphore, #tpu.memory_space<semaphore_mem>>)
    %c1_i32 = arith.constant 1 : i32
    %8 = arith.addi %0, %c1_i32 : i32
    %9 = arith.index_cast %8 : i32 to index
    %10 = memref.load %arg1[%9] : memref<8xi32, #tpu.memory_space<smem>>
    %c1_i32_4 = arith.constant 1 : i32
    %c0_i32_5 = arith.constant 0 : i32
    %11 = tpu.memref_slice %arg2[%10, %c0_i32_5] : memref<11x32xf32, #tpu.memory_space<any>> -> memref<1x32xf32, #tpu.memory_space<any>>
    %c1_i32_6 = arith.constant 1 : i32
    %c0_i32_7 = arith.constant 0 : i32
    %12 = tpu.memref_slice %arg4[%c1_i32_6, %c0_i32_7] : memref<8x32xf32, #tpu.memory_space<vmem>> -> memref<1x32xf32, #tpu.memory_space<vmem>>
    %13 = tpu.memref_slice %arg5[%c1_i32_4] : memref<8x!tpu.dma_semaphore, #tpu.memory_space<semaphore_mem>> -> memref<1x!tpu.dma_semaphore, #tpu.memory_space<semaphore_mem>>
    %14 = tpu.memref_squeeze %13 : memref<1x!tpu.dma_semaphore, #tpu.memory_space<semaphore_mem>> -> memref<!tpu.dma_semaphore, #tpu.memory_space<semaphore_mem>>
    tpu.enqueue_dma source(%11 : memref<1x32xf32, #tpu.memory_space<any>>) target(%12 : memref<1x32xf32, #tpu.memory_space<vmem>>) target_semaphore(%14 : memref<!tpu.dma_semaphore, #tpu.memory_space<semaphore_mem>>)
    %c2_i32 = arith.constant 2 : i32
    %15 = arith.addi %0, %c2_i32 : i32
    %16 = arith.index_cast %15 : i32 to index
    %17 = memref.load %arg1[%16] : memref<8xi32, #tpu.memory_space<smem>>
    %c2_i32_8 = arith.constant 2 : i32
    %c0_i32_9 = arith.constant 0 : i32
    %18 = tpu.memref_slice %arg2[%17, %c0_i32_9] : memref<11x32xf32, #tpu.memory_space<any>> -> memref<1x32xf32, #tpu.memory_space<any>>
    %c2_i32_10 = arith.constant 2 : i32
    %c0_i32_11 = arith.constant 0 : i32
    %19 = tpu.memref_slice %arg4[%c2_i32_10, %c0_i32_11] : memref<8x32xf32, #tpu.memory_space<vmem>> -> memref<1x32xf32, #tpu.memory_space<vmem>>
    %20 = tpu.memref_slice %arg5[%c2_i32_8] : memref<8x!tpu.dma_semaphore, #tpu.memory_space<semaphore_mem>> -> memref<1x!tpu.dma_semaphore, #tpu.memory_space<semaphore_mem>>
    %21 = tpu.memref_squeeze %20 : memref<1x!tpu.dma_semaphore, #tpu.memory_space<semaphore_mem>> -> memref<!tpu.dma_semaphore, #tpu.memory_space<semaphore_mem>>
    tpu.enqueue_dma source(%18 : memref<1x32xf32, #tpu.memory_space<any>>) target(%19 : memref<1x32xf32, #tpu.memory_space<vmem>>) target_semaphore(%21 : memref<!tpu.dma_semaphore, #tpu.memory_space<semaphore_mem>>)
    %c3_i32 = arith.constant 3 : i32
    %22 = arith.addi %0, %c3_i32 : i32
    %23 = arith.index_cast %22 : i32 to index
    %24 = memref.load %arg1[%23] : memref<8xi32, #tpu.memory_space<smem>>
    %c3_i32_12 = arith.constant 3 : i32
    %c0_i32_13 = arith.constant 0 : i32
    %25 = tpu.memref_slice %arg2[%24, %c0_i32_13] : memref<11x32xf32, #tpu.memory_space<any>> -> memref<1x32xf32, #tpu.memory_space<any>>
    %c3_i32_14 = arith.constant 3 : i32
    %c0_i32_15 = arith.constant 0 : i32
    %26 = tpu.memref_slice %arg4[%c3_i32_14, %c0_i32_15] : memref<8x32xf32, #tpu.memory_space<vmem>> -> memref<1x32xf32, #tpu.memory_space<vmem>>
    %27 = tpu.memref_slice %arg5[%c3_i32_12] : memref<8x!tpu.dma_semaphore, #tpu.memory_space<semaphore_mem>> -> memref<1x!tpu.dma_semaphore, #tpu.memory_space<semaphore_mem>>
    %28 = tpu.memref_squeeze %27 : memref<1x!tpu.dma_semaphore, #tpu.memory_space<semaphore_mem>> -> memref<!tpu.dma_semaphore, #tpu.memory_space<semaphore_mem>>
    tpu.enqueue_dma source(%25 : memref<1x32xf32, #tpu.memory_space<any>>) target(%26 : memref<1x32xf32, #tpu.memory_space<vmem>>) target_semaphore(%28 : memref<!tpu.dma_semaphore, #tpu.memory_space<semaphore_mem>>)
    %c4_i32 = arith.constant 4 : i32
    %29 = arith.addi %0, %c4_i32 : i32
    %30 = arith.index_cast %29 : i32 to index
    %31 = memref.load %arg1[%30] : memref<8xi32, #tpu.memory_space<smem>>
    %c4_i32_16 = arith.constant 4 : i32
    %c0_i32_17 = arith.constant 0 : i32
    %32 = tpu.memref_slice %arg2[%31, %c0_i32_17] : memref<11x32xf32, #tpu.memory_space<any>> -> memref<1x32xf32, #tpu.memory_space<any>>
    %c4_i32_18 = arith.constant 4 : i32
    %c0_i32_19 = arith.constant 0 : i32
    %33 = tpu.memref_slice %arg4[%c4_i32_18, %c0_i32_19] : memref<8x32xf32, #tpu.memory_space<vmem>> -> memref<1x32xf32, #tpu.memory_space<vmem>>
    %34 = tpu.memref_slice %arg5[%c4_i32_16] : memref<8x!tpu.dma_semaphore, #tpu.memory_space<semaphore_mem>> -> memref<1x!tpu.dma_semaphore, #tpu.memory_space<semaphore_mem>>
    %35 = tpu.memref_squeeze %34 : memref<1x!tpu.dma_semaphore, #tpu.memory_space<semaphore_mem>> -> memref<!tpu.dma_semaphore, #tpu.memory_space<semaphore_mem>>
    tpu.enqueue_dma source(%32 : memref<1x32xf32, #tpu.memory_space<any>>) target(%33 : memref<1x32xf32, #tpu.memory_space<vmem>>) target_semaphore(%35 : memref<!tpu.dma_semaphore, #tpu.memory_space<semaphore_mem>>)
    %c5_i32 = arith.constant 5 : i32
    %36 = arith.addi %0, %c5_i32 : i32
    %37 = arith.index_cast %36 : i32 to index
    %38 = memref.load %arg1[%37] : memref<8xi32, #tpu.memory_space<smem>>
    %c5_i32_20 = arith.constant 5 : i32
    %c0_i32_21 = arith.constant 0 : i32
    %39 = tpu.memref_slice %arg2[%38, %c0_i32_21] : memref<11x32xf32, #tpu.memory_space<any>> -> memref<1x32xf32, #tpu.memory_space<any>>
    %c5_i32_22 = arith.constant 5 : i32
    %c0_i32_23 = arith.constant 0 : i32
    %40 = tpu.memref_slice %arg4[%c5_i32_22, %c0_i32_23] : memref<8x32xf32, #tpu.memory_space<vmem>> -> memref<1x32xf32, #tpu.memory_space<vmem>>
    %41 = tpu.memref_slice %arg5[%c5_i32_20] : memref<8x!tpu.dma_semaphore, #tpu.memory_space<semaphore_mem>> -> memref<1x!tpu.dma_semaphore, #tpu.memory_space<semaphore_mem>>
    %42 = tpu.memref_squeeze %41 : memref<1x!tpu.dma_semaphore, #tpu.memory_space<semaphore_mem>> -> memref<!tpu.dma_semaphore, #tpu.memory_space<semaphore_mem>>
    tpu.enqueue_dma source(%39 : memref<1x32xf32, #tpu.memory_space<any>>) target(%40 : memref<1x32xf32, #tpu.memory_space<vmem>>) target_semaphore(%42 : memref<!tpu.dma_semaphore, #tpu.memory_space<semaphore_mem>>)
    %c6_i32 = arith.constant 6 : i32
    %43 = arith.addi %0, %c6_i32 : i32
    %44 = arith.index_cast %43 : i32 to index
    %45 = memref.load %arg1[%44] : memref<8xi32, #tpu.memory_space<smem>>
    %c6_i32_24 = arith.constant 6 : i32
    %c0_i32_25 = arith.constant 0 : i32
    %46 = tpu.memref_slice %arg2[%45, %c0_i32_25] : memref<11x32xf32, #tpu.memory_space<any>> -> memref<1x32xf32, #tpu.memory_space<any>>
    %c6_i32_26 = arith.constant 6 : i32
    %c0_i32_27 = arith.constant 0 : i32
    %47 = tpu.memref_slice %arg4[%c6_i32_26, %c0_i32_27] : memref<8x32xf32, #tpu.memory_space<vmem>> -> memref<1x32xf32, #tpu.memory_space<vmem>>
    %48 = tpu.memref_slice %arg5[%c6_i32_24] : memref<8x!tpu.dma_semaphore, #tpu.memory_space<semaphore_mem>> -> memref<1x!tpu.dma_semaphore, #tpu.memory_space<semaphore_mem>>
    %49 = tpu.memref_squeeze %48 : memref<1x!tpu.dma_semaphore, #tpu.memory_space<semaphore_mem>> -> memref<!tpu.dma_semaphore, #tpu.memory_space<semaphore_mem>>
    tpu.enqueue_dma source(%46 : memref<1x32xf32, #tpu.memory_space<any>>) target(%47 : memref<1x32xf32, #tpu.memory_space<vmem>>) target_semaphore(%49 : memref<!tpu.dma_semaphore, #tpu.memory_space<semaphore_mem>>)
    %c7_i32 = arith.constant 7 : i32
    %50 = arith.addi %0, %c7_i32 : i32
    %51 = arith.index_cast %50 : i32 to index
    %52 = memref.load %arg1[%51] : memref<8xi32, #tpu.memory_space<smem>>
    %c7_i32_28 = arith.constant 7 : i32
    %c0_i32_29 = arith.constant 0 : i32
    %53 = tpu.memref_slice %arg2[%52, %c0_i32_29] : memref<11x32xf32, #tpu.memory_space<any>> -> memref<1x32xf32, #tpu.memory_space<any>>
    %c7_i32_30 = arith.constant 7 : i32
    %c0_i32_31 = arith.constant 0 : i32
    %54 = tpu.memref_slice %arg4[%c7_i32_30, %c0_i32_31] : memref<8x32xf32, #tpu.memory_space<vmem>> -> memref<1x32xf32, #tpu.memory_space<vmem>>
    %55 = tpu.memref_slice %arg5[%c7_i32_28] : memref<8x!tpu.dma_semaphore, #tpu.memory_space<semaphore_mem>> -> memref<1x!tpu.dma_semaphore, #tpu.memory_space<semaphore_mem>>
    %56 = tpu.memref_squeeze %55 : memref<1x!tpu.dma_semaphore, #tpu.memory_space<semaphore_mem>> -> memref<!tpu.dma_semaphore, #tpu.memory_space<semaphore_mem>>
    tpu.enqueue_dma source(%53 : memref<1x32xf32, #tpu.memory_space<any>>) target(%54 : memref<1x32xf32, #tpu.memory_space<vmem>>) target_semaphore(%56 : memref<!tpu.dma_semaphore, #tpu.memory_space<semaphore_mem>>)
    %c0_i32_32 = arith.constant 0 : i32
    %57 = arith.addi %0, %c0_i32_32 : i32
    %58 = arith.index_cast %57 : i32 to index
    %59 = memref.load %arg1[%58] : memref<8xi32, #tpu.memory_space<smem>>
    %c0_i32_33 = arith.constant 0 : i32
    %c0_i32_34 = arith.constant 0 : i32
    %60 = tpu.memref_slice %arg2[%59, %c0_i32_34] : memref<11x32xf32, #tpu.memory_space<any>> -> memref<1x32xf32, #tpu.memory_space<any>>
    %c0_i32_35 = arith.constant 0 : i32
    %c0_i32_36 = arith.constant 0 : i32
    %61 = tpu.memref_slice %arg4[%c0_i32_35, %c0_i32_36] : memref<8x32xf32, #tpu.memory_space<vmem>> -> memref<1x32xf32, #tpu.memory_space<vmem>>
    %62 = tpu.memref_slice %arg5[%c0_i32_33] : memref<8x!tpu.dma_semaphore, #tpu.memory_space<semaphore_mem>> -> memref<1x!tpu.dma_semaphore, #tpu.memory_space<semaphore_mem>>
    %63 = tpu.memref_squeeze %62 : memref<1x!tpu.dma_semaphore, #tpu.memory_space<semaphore_mem>> -> memref<!tpu.dma_semaphore, #tpu.memory_space<semaphore_mem>>
    tpu.wait_dma2 semaphore(%63 : memref<!tpu.dma_semaphore, #tpu.memory_space<semaphore_mem>>) src(%60 : memref<1x32xf32, #tpu.memory_space<any>>) dst(%61 : memref<1x32xf32, #tpu.memory_space<vmem>>)
    %c1_i32_37 = arith.constant 1 : i32
    %64 = arith.addi %0, %c1_i32_37 : i32
    %65 = arith.index_cast %64 : i32 to index
    %66 = memref.load %arg1[%65] : memref<8xi32, #tpu.memory_space<smem>>
    %c1_i32_38 = arith.constant 1 : i32
    %c0_i32_39 = arith.constant 0 : i32
    %67 = tpu.memref_slice %arg2[%66, %c0_i32_39] : memref<11x32xf32, #tpu.memory_space<any>> -> memref<1x32xf32, #tpu.memory_space<any>>
    %c1_i32_40 = arith.constant 1 : i32
    %c0_i32_41 = arith.constant 0 : i32
    %68 = tpu.memref_slice %arg4[%c1_i32_40, %c0_i32_41] : memref<8x32xf32, #tpu.memory_space<vmem>> -> memref<1x32xf32, #tpu.memory_space<vmem>>
    %69 = tpu.memref_slice %arg5[%c1_i32_38] : memref<8x!tpu.dma_semaphore, #tpu.memory_space<semaphore_mem>> -> memref<1x!tpu.dma_semaphore, #tpu.memory_space<semaphore_mem>>
    %70 = tpu.memref_squeeze %69 : memref<1x!tpu.dma_semaphore, #tpu.memory_space<semaphore_mem>> -> memref<!tpu.dma_semaphore, #tpu.memory_space<semaphore_mem>>
    tpu.wait_dma2 semaphore(%70 : memref<!tpu.dma_semaphore, #tpu.memory_space<semaphore_mem>>) src(%67 : memref<1x32xf32, #tpu.memory_space<any>>) dst(%68 : memref<1x32xf32, #tpu.memory_space<vmem>>)
    %c2_i32_42 = arith.constant 2 : i32
    %71 = arith.addi %0, %c2_i32_42 : i32
    %72 = arith.index_cast %71 : i32 to index
    %73 = memref.load %arg1[%72] : memref<8xi32, #tpu.memory_space<smem>>
    %c2_i32_43 = arith.constant 2 : i32
    %c0_i32_44 = arith.constant 0 : i32
    %74 = tpu.memref_slice %arg2[%73, %c0_i32_44] : memref<11x32xf32, #tpu.memory_space<any>> -> memref<1x32xf32, #tpu.memory_space<any>>
    %c2_i32_45 = arith.constant 2 : i32
    %c0_i32_46 = arith.constant 0 : i32
    %75 = tpu.memref_slice %arg4[%c2_i32_45, %c0_i32_46] : memref<8x32xf32, #tpu.memory_space<vmem>> -> memref<1x32xf32, #tpu.memory_space<vmem>>
    %76 = tpu.memref_slice %arg5[%c2_i32_43] : memref<8x!tpu.dma_semaphore, #tpu.memory_space<semaphore_mem>> -> memref<1x!tpu.dma_semaphore, #tpu.memory_space<semaphore_mem>>
    %77 = tpu.memref_squeeze %76 : memref<1x!tpu.dma_semaphore, #tpu.memory_space<semaphore_mem>> -> memref<!tpu.dma_semaphore, #tpu.memory_space<semaphore_mem>>
    tpu.wait_dma2 semaphore(%77 : memref<!tpu.dma_semaphore, #tpu.memory_space<semaphore_mem>>) src(%74 : memref<1x32xf32, #tpu.memory_space<any>>) dst(%75 : memref<1x32xf32, #tpu.memory_space<vmem>>)
    %c3_i32_47 = arith.constant 3 : i32
    %78 = arith.addi %0, %c3_i32_47 : i32
    %79 = arith.index_cast %78 : i32 to index
    %80 = memref.load %arg1[%79] : memref<8xi32, #tpu.memory_space<smem>>
    %c3_i32_48 = arith.constant 3 : i32
    %c0_i32_49 = arith.constant 0 : i32
    %81 = tpu.memref_slice %arg2[%80, %c0_i32_49] : memref<11x32xf32, #tpu.memory_space<any>> -> memref<1x32xf32, #tpu.memory_space<any>>
    %c3_i32_50 = arith.constant 3 : i32
    %c0_i32_51 = arith.constant 0 : i32
    %82 = tpu.memref_slice %arg4[%c3_i32_50, %c0_i32_51] : memref<8x32xf32, #tpu.memory_space<vmem>> -> memref<1x32xf32, #tpu.memory_space<vmem>>
    %83 = tpu.memref_slice %arg5[%c3_i32_48] : memref<8x!tpu.dma_semaphore, #tpu.memory_space<semaphore_mem>> -> memref<1x!tpu.dma_semaphore, #tpu.memory_space<semaphore_mem>>
    %84 = tpu.memref_squeeze %83 : memref<1x!tpu.dma_semaphore, #tpu.memory_space<semaphore_mem>> -> memref<!tpu.dma_semaphore, #tpu.memory_space<semaphore_mem>>
    tpu.wait_dma2 semaphore(%84 : memref<!tpu.dma_semaphore, #tpu.memory_space<semaphore_mem>>) src(%81 : memref<1x32xf32, #tpu.memory_space<any>>) dst(%82 : memref<1x32xf32, #tpu.memory_space<vmem>>)
    %c4_i32_52 = arith.constant 4 : i32
    %85 = arith.addi %0, %c4_i32_52 : i32
    %86 = arith.index_cast %85 : i32 to index
    %87 = memref.load %arg1[%86] : memref<8xi32, #tpu.memory_space<smem>>
    %c4_i32_53 = arith.constant 4 : i32
    %c0_i32_54 = arith.constant 0 : i32
    %88 = tpu.memref_slice %arg2[%87, %c0_i32_54] : memref<11x32xf32, #tpu.memory_space<any>> -> memref<1x32xf32, #tpu.memory_space<any>>
    %c4_i32_55 = arith.constant 4 : i32
    %c0_i32_56 = arith.constant 0 : i32
    %89 = tpu.memref_slice %arg4[%c4_i32_55, %c0_i32_56] : memref<8x32xf32, #tpu.memory_space<vmem>> -> memref<1x32xf32, #tpu.memory_space<vmem>>
    %90 = tpu.memref_slice %arg5[%c4_i32_53] : memref<8x!tpu.dma_semaphore, #tpu.memory_space<semaphore_mem>> -> memref<1x!tpu.dma_semaphore, #tpu.memory_space<semaphore_mem>>
    %91 = tpu.memref_squeeze %90 : memref<1x!tpu.dma_semaphore, #tpu.memory_space<semaphore_mem>> -> memref<!tpu.dma_semaphore, #tpu.memory_space<semaphore_mem>>
    tpu.wait_dma2 semaphore(%91 : memref<!tpu.dma_semaphore, #tpu.memory_space<semaphore_mem>>) src(%88 : memref<1x32xf32, #tpu.memory_space<any>>) dst(%89 : memref<1x32xf32, #tpu.memory_space<vmem>>)
    %c5_i32_57 = arith.constant 5 : i32
    %92 = arith.addi %0, %c5_i32_57 : i32
    %93 = arith.index_cast %92 : i32 to index
    %94 = memref.load %arg1[%93] : memref<8xi32, #tpu.memory_space<smem>>
    %c5_i32_58 = arith.constant 5 : i32
    %c0_i32_59 = arith.constant 0 : i32
    %95 = tpu.memref_slice %arg2[%94, %c0_i32_59] : memref<11x32xf32, #tpu.memory_space<any>> -> memref<1x32xf32, #tpu.memory_space<any>>
    %c5_i32_60 = arith.constant 5 : i32
    %c0_i32_61 = arith.constant 0 : i32
    %96 = tpu.memref_slice %arg4[%c5_i32_60, %c0_i32_61] : memref<8x32xf32, #tpu.memory_space<vmem>> -> memref<1x32xf32, #tpu.memory_space<vmem>>
    %97 = tpu.memref_slice %arg5[%c5_i32_58] : memref<8x!tpu.dma_semaphore, #tpu.memory_space<semaphore_mem>> -> memref<1x!tpu.dma_semaphore, #tpu.memory_space<semaphore_mem>>
    %98 = tpu.memref_squeeze %97 : memref<1x!tpu.dma_semaphore, #tpu.memory_space<semaphore_mem>> -> memref<!tpu.dma_semaphore, #tpu.memory_space<semaphore_mem>>
    tpu.wait_dma2 semaphore(%98 : memref<!tpu.dma_semaphore, #tpu.memory_space<semaphore_mem>>) src(%95 : memref<1x32xf32, #tpu.memory_space<any>>) dst(%96 : memref<1x32xf32, #tpu.memory_space<vmem>>)
    %c6_i32_62 = arith.constant 6 : i32
    %99 = arith.addi %0, %c6_i32_62 : i32
    %100 = arith.index_cast %99 : i32 to index
    %101 = memref.load %arg1[%100] : memref<8xi32, #tpu.memory_space<smem>>
    %c6_i32_63 = arith.constant 6 : i32
    %c0_i32_64 = arith.constant 0 : i32
    %102 = tpu.memref_slice %arg2[%101, %c0_i32_64] : memref<11x32xf32, #tpu.memory_space<any>> -> memref<1x32xf32, #tpu.memory_space<any>>
    %c6_i32_65 = arith.constant 6 : i32
    %c0_i32_66 = arith.constant 0 : i32
    %103 = tpu.memref_slice %arg4[%c6_i32_65, %c0_i32_66] : memref<8x32xf32, #tpu.memory_space<vmem>> -> memref<1x32xf32, #tpu.memory_space<vmem>>
    %104 = tpu.memref_slice %arg5[%c6_i32_63] : memref<8x!tpu.dma_semaphore, #tpu.memory_space<semaphore_mem>> -> memref<1x!tpu.dma_semaphore, #tpu.memory_space<semaphore_mem>>
    %105 = tpu.memref_squeeze %104 : memref<1x!tpu.dma_semaphore, #tpu.memory_space<semaphore_mem>> -> memref<!tpu.dma_semaphore, #tpu.memory_space<semaphore_mem>>
    tpu.wait_dma2 semaphore(%105 : memref<!tpu.dma_semaphore, #tpu.memory_space<semaphore_mem>>) src(%102 : memref<1x32xf32, #tpu.memory_space<any>>) dst(%103 : memref<1x32xf32, #tpu.memory_space<vmem>>)
    %c7_i32_67 = arith.constant 7 : i32
    %106 = arith.addi %0, %c7_i32_67 : i32
    %107 = arith.index_cast %106 : i32 to index
    %108 = memref.load %arg1[%107] : memref<8xi32, #tpu.memory_space<smem>>
    %c7_i32_68 = arith.constant 7 : i32
    %c0_i32_69 = arith.constant 0 : i32
    %109 = tpu.memref_slice %arg2[%108, %c0_i32_69] : memref<11x32xf32, #tpu.memory_space<any>> -> memref<1x32xf32, #tpu.memory_space<any>>
    %c7_i32_70 = arith.constant 7 : i32
    %c0_i32_71 = arith.constant 0 : i32
    %110 = tpu.memref_slice %arg4[%c7_i32_70, %c0_i32_71] : memref<8x32xf32, #tpu.memory_space<vmem>> -> memref<1x32xf32, #tpu.memory_space<vmem>>
    %111 = tpu.memref_slice %arg5[%c7_i32_68] : memref<8x!tpu.dma_semaphore, #tpu.memory_space<semaphore_mem>> -> memref<1x!tpu.dma_semaphore, #tpu.memory_space<semaphore_mem>>
    %112 = tpu.memref_squeeze %111 : memref<1x!tpu.dma_semaphore, #tpu.memory_space<semaphore_mem>> -> memref<!tpu.dma_semaphore, #tpu.memory_space<semaphore_mem>>
    tpu.wait_dma2 semaphore(%112 : memref<!tpu.dma_semaphore, #tpu.memory_space<semaphore_mem>>) src(%109 : memref<1x32xf32, #tpu.memory_space<any>>) dst(%110 : memref<1x32xf32, #tpu.memory_space<vmem>>)
    %c0 = arith.constant 0 : index
    %c0_72 = arith.constant 0 : index
    %113 = vector.load %arg4[%c0, %c0_72] : memref<8x32xf32, #tpu.memory_space<vmem>>, vector<8x32xf32>
    %c0_73 = arith.constant 0 : index
    %c0_74 = arith.constant 0 : index
    %114 = vector.load %arg3[%c0_73, %c0_74] : memref<8x32xf32, #tpu.memory_space<vmem>>, vector<8x32xf32>
    tpu.vector_store %arg3[%c0_73, %c0_74], %113 {strides = array<i32>} : memref<8x32xf32, #tpu.memory_space<vmem>>, vector<8x32xf32>,
    return
  }
  func.func @transform_1(%arg0: i32, %arg1: memref<8xi32, #tpu.memory_space<smem>>) -> (i32, i32) {
    %c0_i32 = arith.constant 0 : i32
    %c0_i32_0 = arith.constant 0 : i32
    return %arg0, %c0_i32 : i32, i32
  }
}

</mosaic_0001>

<llo_original>
// kernel: tpu_custom_call.1
$region0: #{tpu_custom_call.1}
  #allocation0 [shape = 'u32[]', space=smem, size = 0x4, offset = 0x4, fixed_abs, tag = 'smem constant byte address 0x4 - core index']
  #allocation1 [shape = 'u32[144,128]{1,0:T(1,128)}', space=vmem, size = 0x12000, scoped, tag = 'internal scratch']
  #allocation2 [shape = 'f32[8,32]{1,0:T(8,128)}', space=vmem, size = 0x1000, scoped, tag = 'scratch operand']
  #allocation3 [shape = 's32[8]{0}', space=sflag, size = 0x20, scoped, tag = 'scratch operand']
  #allocation4 [shape = 's32[1]{0}', space=sflag, size = 0x4, scoped, tag = 'scoped memory for tpu_custom_call.1']
  #allocation5 [shape = 'u8[512]{0}', space=smem, size = 0x200, scoped, tag = 'prefetched SMEM operand 0']
  #allocation8 [shape = 's32[]', space=sflag, size = 0x4, offset = 0, fixed_abs, tag = 'sflag constant byte address 0x0 - dummy sync flag']
  #allocation9 [shape = 's32[]', space=sflag, size = 0x4, offset = 0, fixed_abs, tag = 'sflag constant byte address 0x0 - dummy sync flag']
  #allocation10 [shape = 'u32[]', space=smem, size = 0x4, offset = 0x44, fixed_abs, tag = 'smem constant byte address 0x44 - assertion arg 0']
  #allocation11 [shape = 'u32[]', space=smem, size = 0x4, offset = 0x48, fixed_abs, tag = 'smem constant byte address 0x48 - assertion arg 1']
  #allocation12 [shape = 's32[]', space=sflag, size = 0x4, offset = 0, fixed_abs, tag = 'sflag constant byte address 0x0 - dummy sync flag']
  #allocation13 [shape = 's32[]', space=sflag, size = 0x4, offset = 0, fixed_abs, tag = 'sflag constant byte address 0x0 - dummy sync flag']
  #allocation14 [shape = 's32[]', space=sflag, size = 0x4, offset = 0, fixed_abs, tag = 'sflag constant byte address 0x0 - dummy sync flag']
  #allocation15 [shape = 's32[]', space=sflag, size = 0x4, offset = 0, fixed_abs, tag = 'sflag constant byte address 0x0 - dummy sync flag']
  #allocation16 [shape = 's32[]', space=sflag, size = 0x4, offset = 0, fixed_abs, tag = 'sflag constant byte address 0x0 - dummy sync flag']
  #allocation17 [shape = 's32[]', space=sflag, size = 0x4, offset = 0, fixed_abs, tag = 'sflag constant byte address 0x0 - dummy sync flag']
  #allocation18 [shape = 's32[]', space=sflag, size = 0x4, offset = 0, fixed_abs, tag = 'sflag constant byte address 0x0 - dummy sync flag']
  #allocation19 [shape = 's32[]', space=sflag, size = 0x4, offset = 0, fixed_abs, tag = 'sflag constant byte address 0x0 - dummy sync flag']
  #allocation20 [shape = 's32[]', space=sflag, size = 0x4, offset = 0, fixed_abs, tag = 'sflag constant byte address 0x0 - dummy sync flag']
  #allocation21 [shape = 's32[]', space=sflag, size = 0x4, offset = 0, fixed_abs, tag = 'sflag constant byte address 0x0 - dummy sync flag']
  #allocation22 [shape = 's32[]', space=sflag, size = 0x4, offset = 0, fixed_abs, tag = 'sflag constant byte address 0x0 - dummy sync flag']
  #allocation23 [shape = 's32[]', space=sflag, size = 0x4, offset = 0, fixed_abs, tag = 'sflag constant byte address 0x0 - dummy sync flag']
  #allocation24 [shape = 's32[]', space=sflag, size = 0x4, offset = 0, fixed_abs, tag = 'sflag constant byte address 0x0 - dummy sync flag']
  #allocation25 [shape = 's32[]', space=sflag, size = 0x4, offset = 0, fixed_abs, tag = 'sflag constant byte address 0x0 - dummy sync flag']
  %s0 = inlined_call_operand.hbm [shape: s32[8], index: 0, kind: input, shape index: {}]
  %s1 = inlined_call_operand.hbm [shape: f32[11,32], index: 1, kind: input, shape index: {}]
  %s2 = inlined_call_operand.hbm [shape: f32[8,32], index: 2, kind: output, shape index: {}]
  %s3 = sld [smem:[#allocation0]]
  $region42: #{tpu_custom_call.1} parent=0
    _
  %s5 = ssub.s32 1, %s3
  %s6 = scalar_select 0, %s5, %s3
  %8 = dma.hbm_to_smem %s0, 16, [#allocation5], [#allocation4]
  %9 = dma.done [#allocation4], 16
  %10 = sfence
  $region1: #{tpu_custom_call.1} parent=0
    #allocation6 [shape = 'u8[4096]{0}', space=vmem, size = 0x1000, scoped, tag = 'output window, operand 0, single buffered']
    #allocation7 [shape = 's32[1]{0}', space=sflag, size = 0x4, scoped, tag = 'scoped memory for tpu_custom_call.1']
    %11 = vsyncpa [#allocation7], 0
    %s12 = smul.u32 0, 8
    %s13 = sld [smem:[#allocation5 + %s12]]
    %s14 = smul.addr %s13, 16
    %s15 = scalar_lea.hbm %s1, %s14
    // Predicated region
    $region2: #{tpu_custom_call.1} parent=1 // pred_check
      _
    $region3: #{tpu_custom_call.1} parent=1 // pred_check_branch
      %17 = sbr.rel target = $region5
    $region4: #{tpu_custom_call.1} parent=1 // pred_region
      %18 = sst [smem:[#allocation10]] [#allocation9]
      %19 = sst [smem:[#allocation11]] [#allocation8]
    $region5: #{tpu_custom_call.1} parent=1 // pred_fallthru
      _
    %21 = shalt.err (0)
    %s23 = sshll.u32 [#allocation2], 4
    %s24 = int_to_ptr.vmem [resolvable:$true] %s23
    %26 = dma.hbm_to_vmem [thread:$0]  %s15, 16, %s24, [#allocation3]
    %s27 = sadd.s32 %s12, 1
    %s28 = sld [smem:[#allocation5 + %s27]]
    %s29 = smul.addr %s28, 16
    %s30 = scalar_lea.hbm %s1, %s29
    %s31 = scalar_lea.vmem [#allocation2], 1
    %s32 = scalar_lea.sflag [#allocation3], 1
    // Predicated region
    $region6: #{tpu_custom_call.1} parent=1 // pred_check
      _
    $region7: #{tpu_custom_call.1} parent=1 // pred_check_branch
      %34 = sbr.rel target = $region9
    $region8: #{tpu_custom_call.1} parent=1 // pred_region
      %35 = sst [smem:[#allocation10]] [#allocation13]
      %36 = sst [smem:[#allocation11]] [#allocation12]
    $region9: #{tpu_custom_call.1} parent=1 // pred_fallthru
      _
    %38 = shalt.err (0)
    %s40 = sshll.u32 %s31, 4
    %s41 = int_to_ptr.vmem [resolvable:$true] %s40
    %43 = dma.hbm_to_vmem [thread:$0]  %s30, 16, %s41, %s32
    %s44 = sadd.s32 %s12, 2
    %s45 = sld [smem:[#allocation5 + %s44]]
    %s46 = smul.addr %s45, 16
    %s47 = scalar_lea.hbm %s1, %s46
    %s48 = scalar_lea.vmem [#allocation2], 2
    %s49 = scalar_lea.sflag [#allocation3], 2
    // Predicated region
    $region10: #{tpu_custom_call.1} parent=1 // pred_check
      _
    $region11: #{tpu_custom_call.1} parent=1 // pred_check_branch
      %51 = sbr.rel target = $region13
    $region12: #{tpu_custom_call.1} parent=1 // pred_region
      %52 = sst [smem:[#allocation10]] [#allocation15]
      %53 = sst [smem:[#allocation11]] [#allocation14]
    $region13: #{tpu_custom_call.1} parent=1 // pred_fallthru
      _
    %55 = shalt.err (0)
    %s57 = sshll.u32 %s48, 4
    %s58 = int_to_ptr.vmem [resolvable:$true] %s57
    %60 = dma.hbm_to_vmem [thread:$0]  %s47, 16, %s58, %s49
    %s61 = sadd.s32 %s12, 3
    %s62 = sld [smem:[#allocation5 + %s61]]
    %s63 = smul.addr %s62, 16
    %s64 = scalar_lea.hbm %s1, %s63
    %s65 = scalar_lea.vmem [#allocation2], 3
    %s66 = scalar_lea.sflag [#allocation3], 3
    // Predicated region
    $region14: #{tpu_custom_call.1} parent=1 // pred_check
      _
    $region15: #{tpu_custom_call.1} parent=1 // pred_check_branch
      %68 = sbr.rel target = $region17
    $region16: #{tpu_custom_call.1} parent=1 // pred_region
      %69 = sst [smem:[#allocation10]] [#allocation17]
      %70 = sst [smem:[#allocation11]] [#allocation16]
    $region17: #{tpu_custom_call.1} parent=1 // pred_fallthru
      _
    %72 = shalt.err (0)
    %s74 = sshll.u32 %s65, 4
    %s75 = int_to_ptr.vmem [resolvable:$true] %s74
    %77 = dma.hbm_to_vmem [thread:$0]  %s64, 16, %s75, %s66
    %s78 = sadd.s32 %s12, 4
    %s79 = sld [smem:[#allocation5 + %s78]]
    %s80 = smul.addr %s79, 16
    %s81 = scalar_lea.hbm %s1, %s80
    %s82 = scalar_lea.vmem [#allocation2], 4
    %s83 = scalar_lea.sflag [#allocation3], 4
    // Predicated region
    $region18: #{tpu_custom_call.1} parent=1 // pred_check
      _
    $region19: #{tpu_custom_call.1} parent=1 // pred_check_branch
      %85 = sbr.rel target = $region21
    $region20: #{tpu_custom_call.1} parent=1 // pred_region
      %86 = sst [smem:[#allocation10]] [#allocation19]
      %87 = sst [smem:[#allocation11]] [#allocation18]
    $region21: #{tpu_custom_call.1} parent=1 // pred_fallthru
      _
    %89 = shalt.err (0)
    %s91 = sshll.u32 %s82, 4
    %s92 = int_to_ptr.vmem [resolvable:$true] %s91
    %94 = dma.hbm_to_vmem [thread:$0]  %s81, 16, %s92, %s83
    %s95 = sadd.s32 %s12, 5
    %s96 = sld [smem:[#allocation5 + %s95]]
    %s97 = smul.addr %s96, 16
    %s98 = scalar_lea.hbm %s1, %s97
    %s99 = scalar_lea.vmem [#allocation2], 5
    %s100 = scalar_lea.sflag [#allocation3], 5
    // Predicated region
    $region22: #{tpu_custom_call.1} parent=1 // pred_check
      _
    $region23: #{tpu_custom_call.1} parent=1 // pred_check_branch
      %102 = sbr.rel target = $region25
    $region24: #{tpu_custom_call.1} parent=1 // pred_region
      %103 = sst [smem:[#allocation10]] [#allocation21]
      %104 = sst [smem:[#allocation11]] [#allocation20]
    $region25: #{tpu_custom_call.1} parent=1 // pred_fallthru
      _
    %106 = shalt.err (0)
    %s108 = sshll.u32 %s99, 4
    %s109 = int_to_ptr.vmem [resolvable:$true] %s108
    %111 = dma.hbm_to_vmem [thread:$0]  %s98, 16, %s109, %s100
    %s112 = sadd.s32 %s12, 6
    %s113 = sld [smem:[#allocation5 + %s112]]
    %s114 = smul.addr %s113, 16
    %s115 = scalar_lea.hbm %s1, %s114
    %s116 = scalar_lea.vmem [#allocation2], 6
    %s117 = scalar_lea.sflag [#allocation3], 6
    // Predicated region
    $region26: #{tpu_custom_call.1} parent=1 // pred_check
      _
    $region27: #{tpu_custom_call.1} parent=1 // pred_check_branch
      %119 = sbr.rel target = $region29
    $region28: #{tpu_custom_call.1} parent=1 // pred_region
      %120 = sst [smem:[#allocation10]] [#allocation23]
      %121 = sst [smem:[#allocation11]] [#allocation22]
    $region29: #{tpu_custom_call.1} parent=1 // pred_fallthru
      _
    %123 = shalt.err (0)
    %s125 = sshll.u32 %s116, 4
    %s126 = int_to_ptr.vmem [resolvable:$true] %s125
    %128 = dma.hbm_to_vmem [thread:$0]  %s115, 16, %s126, %s117
    %s129 = sadd.s32 %s12, 7
    %s130 = sld [smem:[#allocation5 + %s129]]
    %s131 = smul.addr %s130, 16
    %s132 = scalar_lea.hbm %s1, %s131
    %s133 = scalar_lea.vmem [#allocation2], 7
    %s134 = scalar_lea.sflag [#allocation3], 7
    // Predicated region
    $region30: #{tpu_custom_call.1} parent=1 // pred_check
      _
    $region31: #{tpu_custom_call.1} parent=1 // pred_check_branch
      %136 = sbr.rel target = $region33
    $region32: #{tpu_custom_call.1} parent=1 // pred_region
      %137 = sst [smem:[#allocation10]] [#allocation25]
      %138 = sst [smem:[#allocation11]] [#allocation24]
    $region33: #{tpu_custom_call.1} parent=1 // pred_fallthru
      _
    %140 = shalt.err (0)
    %s142 = sshll.u32 %s133, 4
    %s143 = int_to_ptr.vmem [resolvable:$true] %s142
    %145 = dma.hbm_to_vmem [thread:$0]  %s132, 16, %s143, %s134
    %s146 = sld [smem:[#allocation5 + %s12]]
    %s147 = smul.u32 1, 1
    %s148 = sshll.u32 %s147, 4
    %149 = dma.done [#allocation3], %s148
    %s150 = sld [smem:[#allocation5 + %s27]]
    %s151 = sshll.u32 %s147, 4
    %152 = dma.done %s32, %s151
    %s153 = sld [smem:[#allocation5 + %s44]]
    %s154 = sshll.u32 %s147, 4
    %155 = dma.done %s49, %s154
    %s156 = sld [smem:[#allocation5 + %s61]]
    %s157 = sshll.u32 %s147, 4
    %158 = dma.done %s66, %s157
    %s159 = sld [smem:[#allocation5 + %s78]]
    %s160 = sshll.u32 %s147, 4
    %161 = dma.done %s83, %s160
    %s162 = sld [smem:[#allocation5 + %s95]]
    %s163 = sshll.u32 %s147, 4
    %164 = dma.done %s100, %s163
    %s165 = sld [smem:[#allocation5 + %s112]]
    %s166 = sshll.u32 %s147, 4
    %167 = dma.done %s117, %s166
    %s168 = sld [smem:[#allocation5 + %s129]]
    %s169 = sshll.u32 %s147, 4
    %170 = dma.done %s134, %s169
    %v171 = vld [vmem:[#allocation2] sm:$0xff]
    %vm172 = vcmask 261120
    %173 = vst.msk [vmem:[#allocation6] sm:$0xff] %vm172, %v171
    // Predicated region
    $region34: #{tpu_custom_call.1} parent=1 // pred_check
      _
    $region35: #{tpu_custom_call.1} parent=1 // pred_check_branch
      %175 = sbr.rel (0) target = $region37
    $region36: #{tpu_custom_call.1} parent=1 // pred_region
      %s177 = ssub.s32 128, 128
      %178 = vsyncadd [#allocation7], %s177
      %s180 = sshll.u32 [#allocation6], 4
      %s181 = int_to_ptr.vmem [resolvable:$true] %s180
      %183 = dma.vmem_to_hbm [thread:$0]  %s181, 128, %s2, [#allocation7]
    $region37: #{tpu_custom_call.1} parent=1 // pred_fallthru
      _
    // Predicated region
    $region38: #{tpu_custom_call.1} parent=1 // pred_check
      _
    $region39: #{tpu_custom_call.1} parent=1 // pred_check_branch
      %185 = sbr.rel (0) target = $region41
    $region40: #{tpu_custom_call.1} parent=1 // pred_region
      %186 = dma.done [#allocation7], 128
    $region41: #{tpu_custom_call.1} parent=1 // pred_fallthru
      _
    %187 = vsyncpa [#allocation7], 1
  %188 = vsyncmov [#allocation3]
  %s189 = vpop.sfrf %188
  %p190 = scmp.eq.s32.totalorder %s189, 0
  %p191 = pneg %p190
  %193 = shalt.err (%p191)
  %s194 = scalar_lea.sflag [#allocation3], 1
  %195 = vsyncmov %s194
  %s196 = vpop.sfrf %195
  %p197 = scmp.eq.s32.totalorder %s196, 0
  %p198 = pneg %p197
  %200 = shalt.err (%p198)
  %s201 = scalar_lea.sflag [#allocation3], 2
  %202 = vsyncmov %s201
  %s203 = vpop.sfrf %202
  %p204 = scmp.eq.s32.totalorder %s203, 0
  %p205 = pneg %p204
  %207 = shalt.err (%p205)
  %s208 = scalar_lea.sflag [#allocation3], 3
  %209 = vsyncmov %s208
  %s210 = vpop.sfrf %209
  %p211 = scmp.eq.s32.totalorder %s210, 0
  %p212 = pneg %p211
  %214 = shalt.err (%p212)
  %s215 = scalar_lea.sflag [#allocation3], 4
  %216 = vsyncmov %s215
  %s217 = vpop.sfrf %216
  %p218 = scmp.eq.s32.totalorder %s217, 0
  %p219 = pneg %p218
  %221 = shalt.err (%p219)
  %s222 = scalar_lea.sflag [#allocation3], 5
  %223 = vsyncmov %s222
  %s224 = vpop.sfrf %223
  %p225 = scmp.eq.s32.totalorder %s224, 0
  %p226 = pneg %p225
  %228 = shalt.err (%p226)
  %s229 = scalar_lea.sflag [#allocation3], 6
  %230 = vsyncmov %s229
  %s231 = vpop.sfrf %230
  %p232 = scmp.eq.s32.totalorder %s231, 0
  %p233 = pneg %p232
  %235 = shalt.err (%p233)
  %s236 = scalar_lea.sflag [#allocation3], 7
  %237 = vsyncmov %s236
  %s238 = vpop.sfrf %237
  %p239 = scmp.eq.s32.totalorder %s238, 0
  %p240 = pneg %p239
  %242 = shalt.err (%p240)

</llo_original>
